<compile_context>
chip_gen: v7x
topology: tpu7x:2x2x1
jax: 0.10.0
libtpu: 0.0.40
codegen_flags: <defaults>
</compile_context>

<pallas_src>
import functools

import jax
import jax.numpy as jnp
from jax.experimental import pallas as pl
from jax.experimental.pallas import tpu as pltpu


# ---------------------------------------------------------------------------
# Pallas kernel: one fused x-matmul + MLP, all operands VMEM-resident
# ---------------------------------------------------------------------------
def model_kernel(x_ref, h1bias_ref, mbig_ref, bbig_ref,
                 w1a_ref, w2_ref, b2_ref, w3_ref,
                 out_ref, *, conv_pad):
    x = x_ref[...]                                   # (Bp, L)

    # Single MXU op: x @ [M_conv_pad | W_skip_pad] + [b_conv_pad | b_skip+b3]
    r = jnp.dot(x, mbig_ref[...], preferred_element_type=jnp.float32) + bbig_ref[...]
    h0 = jnp.maximum(r[:, :conv_pad], 0.0)           # (Bp, conv_pad)  conv feats
    skip = r[:, conv_pad:]                           # (Bp, out_pad)   x@Wskip+bskip+b3

    # fc1: conv part via MXU, embedding part pre-folded into h1bias (wrapper)
    h1 = jnp.maximum(
        jnp.dot(h0, w1a_ref[...], preferred_element_type=jnp.float32) + h1bias_ref[...],
        0.0)                                         # (Bp, H)

    h2 = jnp.maximum(
        jnp.dot(h1, w2_ref[...], preferred_element_type=jnp.float32) + b2_ref[...],
        0.0)                                         # (Bp, H//2)

    h3 = jnp.dot(h2, w3_ref[...], preferred_element_type=jnp.float32)  # (Bp, out_pad)

    out_ref[...] = h3 + skip                         # (Bp, out_pad) lane-dense store


def run_model(x, t, params):
    B, L = x.shape
    conv_pad = params["conv_pad"]
    out_pad = params["out_pad"]
    H = params["w1a_pad"].shape[1]
    B_pad = max(8, ((B + 7) // 8) * 8)               # full f32 sublane group

    # Glue (plain JAX): embedding gather + tiny fc1 embedding branch.
    t_emb = params["emb_table"][t]                               # (B, E)
    h1_bias = t_emb @ params["w1b"] + params["b1"]               # (B, H)

    x_pad = jnp.zeros((B_pad, L), jnp.float32).at[:B].set(x)
    h1b_pad = jnp.zeros((B_pad, H), jnp.float32).at[:B].set(h1_bias)

    vmem = pl.BlockSpec(memory_space=pltpu.MemorySpace.VMEM)
    args = (x_pad, h1b_pad,
            params["m_big"], params["b_big"],
            params["w1a_pad"], params["w2"], params["b2"], params["w3_pad"])

    out = pl.pallas_call(
        functools.partial(model_kernel, conv_pad=conv_pad),
        out_shape=jax.ShapeDtypeStruct((B_pad, out_pad), jnp.float32),
        in_specs=[vmem] * len(args),
        out_specs=vmem,
    )(*args)
    return out[:B, :L]


# ---------------------------------------------------------------------------
# Parameter setup (glue, plain JAX)
# ---------------------------------------------------------------------------
def conv1d_to_dense(w, b, L, conv_pad):
    """Conv1d(1, C, 3, no pad) -> dense (L, conv_pad) matrix + (1, conv_pad) bias.

    out_flat[b, c*(L-2) + p] = sum_k w[c, 0, k] * x[b, p + k] + b[c]
    (matches torch's (B, C, L-2).view(B, -1) channel-major flatten).
    Columns >= C*(L-2) are zero padding (lane alignment).
    """
    C = w.shape[0]
    P = L - 2
    M = jnp.zeros((L, conv_pad), dtype=jnp.float32)
    p = jnp.arange(P)
    for c in range(C):
        for k in range(3):
            M = M.at[p + k, c * P + p].set(w[c, 0, k])
    b_flat = jnp.zeros((1, conv_pad), jnp.float32).at[0, :C * P].set(jnp.repeat(b, P))
    return M, b_flat


def init_params(key, input_size, hidden_size, embedding_size, T):
    num_channels = 30
    P = input_size - 2
    conv_size = P * num_channels
    conv_pad = ((conv_size + 127) // 128) * 128          # 420 -> 512
    out_pad = ((input_size + 127) // 128) * 128          # 16  -> 128
    ks = jax.random.split(key, 12)

    def u(k, shape, scale=0.1):
        return jax.random.uniform(k, shape, jnp.float32, -scale, scale)

    # Raw "torch-like" parameters (used by the reference).
    emb_table = u(ks[0], (T, embedding_size), 1.0)
    w_conv = u(ks[1], (num_channels, 1, 3))
    b_conv = u(ks[2], (num_channels,))
    w1 = u(ks[3], (conv_size + embedding_size, hidden_size))   # stored (in, out)
    b1 = u(ks[4], (1, hidden_size))
    w2 = u(ks[5], (hidden_size, hidden_size // 2))
    b2 = u(ks[6], (1, hidden_size // 2))
    w3 = u(ks[7], (hidden_size // 2, input_size))
    b3 = u(ks[8], (1, input_size))
    wskip = u(ks[9], (input_size, input_size))
    bskip = u(ks[10], (1, input_size))

    # ---- Kernel-side fused / padded parameters ----
    m_conv, b_conv_flat = conv1d_to_dense(w_conv, b_conv, input_size, conv_pad)

    wskip_pad = jnp.zeros((input_size, out_pad), jnp.float32).at[:, :input_size].set(wskip)
    bskip_b3_pad = jnp.zeros((1, out_pad), jnp.float32).at[:, :input_size].set(bskip + b3)

    m_big = jnp.concatenate([m_conv, wskip_pad], axis=1)         # (L, conv_pad+out_pad)
    b_big = jnp.concatenate([b_conv_flat, bskip_b3_pad], axis=1)  # (1, conv_pad+out_pad)

    w1a_pad = jnp.zeros((conv_pad, hidden_size), jnp.float32).at[:conv_size].set(w1[:conv_size])
    w1b = w1[conv_size:]                                          # (E, H)
    w3_pad = jnp.zeros((hidden_size // 2, out_pad), jnp.float32).at[:, :input_size].set(w3)

    return dict(
        # raw (reference)
        emb_table=emb_table, w_conv=w_conv, b_conv_raw=b_conv,
        w1=w1, b1=b1, w2=w2, b2=b2, w3=w3, b3=b3, wskip=wskip, bskip=bskip,
        # kernel-side
        m_big=m_big, b_big=b_big, w1a_pad=w1a_pad, w1b=w1b, w3_pad=w3_pad,
        conv_pad=conv_pad, out_pad=out_pad,
    )


# ---------------------------------------------------------------------------
# Pure-JAX reference (original torch semantics, for correctness check)
# ---------------------------------------------------------------------------
def reference_forward(x, t, p):
    L = x.shape[1]
    P = L - 2
    t_emb = p["emb_table"][t]
    patches = jnp.stack([x[:, k:k + P] for k in range(3)], axis=-1)       # (B,P,3)
    conv = jnp.einsum("bpk,ck->bcp", patches, p["w_conv"][:, 0, :]) \
        + p["b_conv_raw"][None, :, None]
    conv = jnp.maximum(conv, 0.0).reshape(x.shape[0], -1)                 # (B, conv_size)
    h = jnp.concatenate([conv, t_emb], axis=1)
    h = jnp.maximum(h @ p["w1"] + p["b1"], 0.0)
    h = jnp.maximum(h @ p["w2"] + p["b2"], 0.0)
    h = h @ p["w3"] + p["b3"]
    return h + (x @ p["wskip"] + p["bskip"])


# ---------------------------------------------------------------------------
if __name__ == "__main__":
    input_size, hidden_size, embedding_size, T = 16, 32, 8, 10
    B = 4

    key = jax.random.PRNGKey(0)
    kx, kt, kp = jax.random.split(key, 3)

    x = jax.random.normal(kx, (B, input_size), jnp.float32)
    t = jax.random.randint(kt, (B,), 0, T, jnp.int32)

    params = init_params(kp, input_size, hidden_size, embedding_size, T)

    out = run_model(x, t, params)
    out = jax.block_until_ready(out)

    ref = reference_forward(x, t, params)
    assert out.shape == (B, input_size)
    assert jnp.allclose(out, ref, atol=1e-4, rtol=1e-4), "mismatch vs JAX reference"

    print("KERNEL_OK")
</pallas_src>

<mosaic_0001>
module attributes {stable_mosaic.version = 11 : i64} {
  func.func @model_kernel(%arg0: memref<8x16xf32, #tpu.memory_space<vmem>>, %arg1: memref<8x32xf32, #tpu.memory_space<vmem>>, %arg2: memref<16x640xf32, #tpu.memory_space<vmem>>, %arg3: memref<1x640xf32, #tpu.memory_space<vmem>>, %arg4: memref<512x32xf32, #tpu.memory_space<vmem>>, %arg5: memref<32x16xf32, #tpu.memory_space<vmem>>, %arg6: memref<1x16xf32, #tpu.memory_space<vmem>>, %arg7: memref<16x128xf32, #tpu.memory_space<vmem>>, %arg8: memref<8x128xf32, #tpu.memory_space<vmem>>) attributes {dimension_semantics = [], scalar_prefetch = 0 : i64, scratch_operands = 0 : i64, tpu.core_type = #tpu.core_type<tc>} {
    %c0 = arith.constant 0 : index
    %c0_0 = arith.constant 0 : index
    %0 = vector.load %arg0[%c0, %c0_0] : memref<8x16xf32, #tpu.memory_space<vmem>>, vector<8x16xf32>
    %c0_1 = arith.constant 0 : index
    %c0_2 = arith.constant 0 : index
    %1 = vector.load %arg2[%c0_1, %c0_2] : memref<16x640xf32, #tpu.memory_space<vmem>>, vector<16x640xf32>
    %cst = arith.constant dense<0.000000e+00> : vector<8x640xf32>
    %2 = tpu.matmul %0, %1, %cst {dimension_numbers = #tpu.dot_dimension_numbers<[1], [0], [0], [1], [0, 0, 1, 1], [], []>} : vector<8x16xf32>, vector<16x640xf32>, vector<8x640xf32> -> vector<8x640xf32>
    %c0_3 = arith.constant 0 : index
    %c0_4 = arith.constant 0 : index
    %3 = vector.load %arg3[%c0_3, %c0_4] : memref<1x640xf32, #tpu.memory_space<vmem>>, vector<1x640xf32>
    %4 = vector.broadcast %3 : vector<1x640xf32> to vector<8x640xf32>
    %5 = arith.addf %2, %4 : vector<8x640xf32>
    %6 = vector.extract_strided_slice %5 {offsets = [0, 0], sizes = [8, 512], strides = [1, 1]} : vector<8x640xf32> to vector<8x512xf32>
    %cst_5 = arith.constant 0.000000e+00 : f32
    %7 = vector.broadcast %cst_5 : f32 to vector<8x512xf32>
    %8 = arith.maximumf %6, %7 : vector<8x512xf32>
    %9 = vector.extract_strided_slice %5 {offsets = [0, 512], sizes = [8, 128], strides = [1, 1]} : vector<8x640xf32> to vector<8x128xf32>
    %c0_6 = arith.constant 0 : index
    %c0_7 = arith.constant 0 : index
    %10 = vector.load %arg4[%c0_6, %c0_7] : memref<512x32xf32, #tpu.memory_space<vmem>>, vector<512x32xf32>
    %cst_8 = arith.constant dense<0.000000e+00> : vector<8x32xf32>
    %11 = tpu.matmul %8, %10, %cst_8 {dimension_numbers = #tpu.dot_dimension_numbers<[1], [0], [0], [1], [0, 0, 1, 1], [], []>} : vector<8x512xf32>, vector<512x32xf32>, vector<8x32xf32> -> vector<8x32xf32>
    %c0_9 = arith.constant 0 : index
    %c0_10 = arith.constant 0 : index
    %12 = vector.load %arg1[%c0_9, %c0_10] : memref<8x32xf32, #tpu.memory_space<vmem>>, vector<8x32xf32>
    %13 = arith.addf %11, %12 : vector<8x32xf32>
    %cst_11 = arith.constant 0.000000e+00 : f32
    %14 = vector.broadcast %cst_11 : f32 to vector<8x32xf32>
    %15 = arith.maximumf %13, %14 : vector<8x32xf32>
    %c0_12 = arith.constant 0 : index
    %c0_13 = arith.constant 0 : index
    %16 = vector.load %arg5[%c0_12, %c0_13] : memref<32x16xf32, #tpu.memory_space<vmem>>, vector<32x16xf32>
    %cst_14 = arith.constant dense<0.000000e+00> : vector<8x16xf32>
    %17 = tpu.matmul %15, %16, %cst_14 {dimension_numbers = #tpu.dot_dimension_numbers<[1], [0], [0], [1], [0, 0, 1, 1], [], []>} : vector<8x32xf32>, vector<32x16xf32>, vector<8x16xf32> -> vector<8x16xf32>
    %c0_15 = arith.constant 0 : index
    %c0_16 = arith.constant 0 : index
    %18 = vector.load %arg6[%c0_15, %c0_16] : memref<1x16xf32, #tpu.memory_space<vmem>>, vector<1x16xf32>
    %19 = vector.broadcast %18 : vector<1x16xf32> to vector<8x16xf32>
    %20 = arith.addf %17, %19 : vector<8x16xf32>
    %cst_17 = arith.constant 0.000000e+00 : f32
    %21 = vector.broadcast %cst_17 : f32 to vector<8x16xf32>
    %22 = arith.maximumf %20, %21 : vector<8x16xf32>
    %c0_18 = arith.constant 0 : index
    %c0_19 = arith.constant 0 : index
    %23 = vector.load %arg7[%c0_18, %c0_19] : memref<16x128xf32, #tpu.memory_space<vmem>>, vector<16x128xf32>
    %cst_20 = arith.constant dense<0.000000e+00> : vector<8x128xf32>
    %24 = tpu.matmul %22, %23, %cst_20 {dimension_numbers = #tpu.dot_dimension_numbers<[1], [0], [0], [1], [0, 0, 1, 1], [], []>} : vector<8x16xf32>, vector<16x128xf32>, vector<8x128xf32> -> vector<8x128xf32>
    %25 = arith.addf %24, %9 : vector<8x128xf32>
    %c0_21 = arith.constant 0 : index
    %c0_22 = arith.constant 0 : index
    %26 = vector.load %arg8[%c0_21, %c0_22] : memref<8x128xf32, #tpu.memory_space<vmem>>, vector<8x128xf32>
    tpu.vector_store %arg8[%c0_21, %c0_22], %25 {strides = array<i32>} : memref<8x128xf32, #tpu.memory_space<vmem>>, vector<8x128xf32>,
    return
  }
}

</mosaic_0001>

<llo_original>
// kernel: tpu_custom_call.1
$region0: #{tpu_custom_call.1}
  #allocation0 [shape = 'u32[]', space=smem, size = 0x4, offset = 0x4, fixed_abs, tag = 'smem constant byte address 0x4 - core index']
  #allocation1 [shape = 'u32[144,128]{1,0:T(1,128)}', space=vmem, size = 0x12000, scoped, tag = 'internal scratch']
  %s0 = inlined_call_operand.vmem [shape: f32[8,16], index: 0, kind: input, shape index: {}]
  %s1 = inlined_call_operand.vmem [shape: f32[8,32], index: 1, kind: input, shape index: {}]
  %s2 = inlined_call_operand.vmem [shape: f32[16,640], index: 2, kind: input, shape index: {}]
  %s3 = inlined_call_operand.vmem [shape: f32[1,640], index: 3, kind: input, shape index: {}]
  %s4 = inlined_call_operand.vmem [shape: f32[512,32], index: 4, kind: input, shape index: {}]
  %s5 = inlined_call_operand.vmem [shape: f32[32,16], index: 5, kind: input, shape index: {}]
  %s6 = inlined_call_operand.vmem [shape: f32[1,16], index: 6, kind: input, shape index: {}]
  %s7 = inlined_call_operand.vmem [shape: f32[16,128], index: 7, kind: input, shape index: {}]
  %s8 = inlined_call_operand.hbm [shape: f32[8,128], index: 8, kind: output, shape index: {}]
  %s9 = sld [smem:[#allocation0]]
  $region42: #{tpu_custom_call.1} parent=0
    _
  %s11 = ssub.s32 1, %s9
  %s12 = scalar_select 0, %s11, %s9
  $region1: #{tpu_custom_call.1} parent=0
    #allocation2 [shape = 'u8[4096]{0}', space=vmem, size = 0x1000, scoped, tag = 'output window, operand 0, single buffered']
    #allocation3 [shape = 's32[1]{0}', space=sflag, size = 0x4, scoped, tag = 'scoped memory for tpu_custom_call.1']
    %13 = vsyncpa [#allocation3], 0
    // Predicated region
    $region2: #{tpu_custom_call.1} parent=1 // pred_check
      _
    $region3: #{tpu_custom_call.1} parent=1 // pred_check_branch
      %15 = sbr.rel (0) target = $region5
    $region4: #{tpu_custom_call.1} parent=1 // pred_region
      _
    $region5: #{tpu_custom_call.1} parent=1 // pred_fallthru
      _
    // Predicated region
    $region6: #{tpu_custom_call.1} parent=1 // pred_check
      _
    $region7: #{tpu_custom_call.1} parent=1 // pred_check_branch
      %17 = sbr.rel (0) target = $region9
    $region8: #{tpu_custom_call.1} parent=1 // pred_region
      _
    $region9: #{tpu_custom_call.1} parent=1 // pred_fallthru
      _
    // Predicated region
    $region10: #{tpu_custom_call.1} parent=1 // pred_check
      _
    $region11: #{tpu_custom_call.1} parent=1 // pred_check_branch
      %19 = sbr.rel (0) target = $region13
    $region12: #{tpu_custom_call.1} parent=1 // pred_region
      _
    $region13: #{tpu_custom_call.1} parent=1 // pred_fallthru
      _
    // Predicated region
    $region14: #{tpu_custom_call.1} parent=1 // pred_check
      _
    $region15: #{tpu_custom_call.1} parent=1 // pred_check_branch
      %21 = sbr.rel (0) target = $region17
    $region16: #{tpu_custom_call.1} parent=1 // pred_region
      _
    $region17: #{tpu_custom_call.1} parent=1 // pred_fallthru
      _
    // Predicated region
    $region18: #{tpu_custom_call.1} parent=1 // pred_check
      _
    $region19: #{tpu_custom_call.1} parent=1 // pred_check_branch
      %23 = sbr.rel (0) target = $region21
    $region20: #{tpu_custom_call.1} parent=1 // pred_region
      _
    $region21: #{tpu_custom_call.1} parent=1 // pred_fallthru
      _
    // Predicated region
    $region22: #{tpu_custom_call.1} parent=1 // pred_check
      _
    $region23: #{tpu_custom_call.1} parent=1 // pred_check_branch
      %25 = sbr.rel (0) target = $region25
    $region24: #{tpu_custom_call.1} parent=1 // pred_region
      _
    $region25: #{tpu_custom_call.1} parent=1 // pred_fallthru
      _
    // Predicated region
    $region26: #{tpu_custom_call.1} parent=1 // pred_check
      _
    $region27: #{tpu_custom_call.1} parent=1 // pred_check_branch
      %27 = sbr.rel (0) target = $region29
    $region28: #{tpu_custom_call.1} parent=1 // pred_region
      _
    $region29: #{tpu_custom_call.1} parent=1 // pred_fallthru
      _
    // Predicated region
    $region30: #{tpu_custom_call.1} parent=1 // pred_check
      _
    $region31: #{tpu_custom_call.1} parent=1 // pred_check_branch
      %29 = sbr.rel (0) target = $region33
    $region32: #{tpu_custom_call.1} parent=1 // pred_region
      _
    $region33: #{tpu_custom_call.1} parent=1 // pred_fallthru
      _
    %v30 = vld [vmem:[%s0] sm:$0xff]
    %v31 = vld [vmem:[%s2] sm:$0xff]
    %v32 = vld [vmem:[%s2 + $0x8] sm:$0xff]
    %v33 = vld [vmem:[%s2 + $0x10] sm:$0xff]
    %v34 = vld [vmem:[%s2 + $0x18] sm:$0xff]
    %v35 = vld [vmem:[%s2 + $0x20] sm:$0xff]
    %v36 = vld [vmem:[%s2 + $0x28] sm:$0xff]
    %v37 = vld [vmem:[%s2 + $0x30] sm:$0xff]
    %v38 = vld [vmem:[%s2 + $0x38] sm:$0xff]
    %v39 = vld [vmem:[%s2 + $0x40] sm:$0xff]
    %v40 = vld [vmem:[%s2 + $0x48] sm:$0xff]
    %v41 = vld [vmem:[%s3] sm:$0x1f]
    %v43 = vlaneseq
    %v44 = vshrl.u32 %v43, 7
    %v45 = vsub.s32 0, %v44
    %v46 = vrot.slane %v41, %v45
    %v47 = vlaneseq
    %v48 = vshrl.u32 %v47, 7
    %v49 = vsub.s32 1, %v48
    %v50 = vrot.slane %v41, %v49
    %v51 = vlaneseq
    %v52 = vshrl.u32 %v51, 7
    %v53 = vsub.s32 2, %v52
    %v54 = vrot.slane %v41, %v53
    %v55 = vlaneseq
    %v56 = vshrl.u32 %v55, 7
    %v57 = vsub.s32 3, %v56
    %v58 = vrot.slane %v41, %v57
    %v59 = vlaneseq
    %v60 = vshrl.u32 %v59, 7
    %v61 = vsub.s32 4, %v60
    %v62 = vrot.slane %v41, %v61
    %vm68 = vcmask 130048
    %v70 = vsel %vm68, %v30, 0
    %72 = vmatprep.subr.mxu0 %v32
    %73 = vmatpush1.msra.mxu0 %v31
    %74 = vmatprep.subr.mxu0 %v37
    %75 = vmatpush1.msra.mxu0 %v36
    %76 = vmatprep.subr.mxu0 0.0
    %77 = vmatpush1.msra.mxu0 0.0
    %78 = vmatprep.subr.mxu0 0.0
    %79 = vmatpush1.msra.mxu0 0.0
    %80 = vmatprep.subr.mxu0 0.0
    %81 = vmatpush1.msra.mxu0 0.0
    %82 = vmatprep.subr.mxu0 0.0
    %83 = vmatpush1.msra.mxu0 0.0
    %84 = vmatprep.subr.mxu0 0.0
    %85 = vmatpush1.msra.mxu0 0.0
    %86 = vmatprep.subr.mxu0 0.0
    %87 = vmatpush1.msra.mxu0 0.0
    %88 = vmatprep.subr.mxu0 0.0
    %89 = vmatpush1.msra.mxu0 0.0
    %90 = vmatprep.subr.mxu0 0.0
    %91 = vmatpush1.msra.mxu0 0.0
    %92 = vmatprep.subr.mxu0 0.0
    %93 = vmatpush1.msra.mxu0 0.0
    %94 = vmatprep.subr.mxu0 0.0
    %95 = vmatpush1.msra.mxu0 0.0
    %96 = vmatprep.subr.mxu0 0.0
    %97 = vmatpush1.msra.mxu0 0.0
    %98 = vmatprep.subr.mxu0 0.0
    %99 = vmatpush1.msra.mxu0 0.0
    %100 = vmatprep.subr.mxu0 0.0
    %101 = vmatpush1.msra.mxu0 0.0
    %102 = vmatprep.subr.mxu0 0.0
    %103 = vmatpush1.msra.mxu0 0.0
    %104 = vmatprep.subr.mxu0 0.0
    %105 = vmatpush1.msra.mxu0 0.0
    %106 = vmatprep.subr.mxu0 0.0
    %107 = vmatpush1.msra.mxu0 0.0
    %108 = vmatprep.subr.mxu0 0.0
    %109 = vmatpush1.msra.mxu0 0.0
    %110 = vmatprep.subr.mxu0 0.0
    %111 = vmatpush1.msra.mxu0 0.0
    %112 = vmatprep.subr.mxu0 0.0
    %113 = vmatpush1.msra.mxu0 0.0
    %114 = vmatprep.subr.mxu0 0.0
    %115 = vmatpush1.msra.mxu0 0.0
    %116 = vmatprep.subr.mxu0 0.0
    %117 = vmatpush1.msra.mxu0 0.0
    %118 = vmatprep.subr.mxu0 0.0
    %119 = vmatpush1.msra.mxu0 0.0
    %120 = vmatprep.subr.mxu0 0.0
    %121 = vmatpush1.msra.mxu0 0.0
    %122 = vmatprep.subr.mxu0 0.0
    %123 = vmatpush1.msra.mxu0 0.0
    %124 = vmatprep.subr.mxu0 0.0
    %125 = vmatpush1.msra.mxu0 0.0
    %126 = vmatprep.subr.mxu0 0.0
    %127 = vmatpush1.msra.mxu0 0.0
    %128 = vmatprep.subr.mxu0 0.0
    %129 = vmatpush1.msra.mxu0 0.0
    %130 = vmatprep.subr.mxu0 0.0
    %131 = vmatpush1.msra.mxu0 0.0
    %132 = vmatprep.subr.mxu0 0.0
    %133 = vmatpush1.msra.mxu0 0.0
    %134 = vmatprep.subr.mxu0 0.0
    %135 = vmatpush1.msra.mxu0 0.0
    %136 = vmatprep.mubr.f32.mxu0 0.0
    %137 = vmatmul.mubr.f32.gmra.mrb[0].mxu0 %v70
    %v138 = vpop.f32.mrb[0].mxu0
    %v139 = vadd.f32 %v46, %v138
    %v140 = vpop.f32.mrb[0].mxu0
    %v141 = vadd.f32 %v50, %v140
    %142 = vdwg.mxu0
    %143 = vmatprep.subr.mxu0 %v34
    %144 = vmatpush1.msra.mxu0 %v33
    %145 = vmatprep.subr.mxu0 %v39
    %146 = vmatpush1.msra.mxu0 %v38
    %147 = vmatprep.subr.mxu0 0.0
    %148 = vmatpush1.msra.mxu0 0.0
    %149 = vmatprep.subr.mxu0 0.0
    %150 = vmatpush1.msra.mxu0 0.0
    %151 = vmatprep.subr.mxu0 0.0
    %152 = vmatpush1.msra.mxu0 0.0
    %153 = vmatprep.subr.mxu0 0.0
    %154 = vmatpush1.msra.mxu0 0.0
    %155 = vmatprep.subr.mxu0 0.0
    %156 = vmatpush1.msra.mxu0 0.0
    %157 = vmatprep.subr.mxu0 0.0
    %158 = vmatpush1.msra.mxu0 0.0
    %159 = vmatprep.subr.mxu0 0.0
    %160 = vmatpush1.msra.mxu0 0.0
    %161 = vmatprep.subr.mxu0 0.0
    %162 = vmatpush1.msra.mxu0 0.0
    %163 = vmatprep.subr.mxu0 0.0
    %164 = vmatpush1.msra.mxu0 0.0
    %165 = vmatprep.subr.mxu0 0.0
    %166 = vmatpush1.msra.mxu0 0.0
    %167 = vmatprep.subr.mxu0 0.0
    %168 = vmatpush1.msra.mxu0 0.0
    %169 = vmatprep.subr.mxu0 0.0
    %170 = vmatpush1.msra.mxu0 0.0
    %171 = vmatprep.subr.mxu0 0.0
    %172 = vmatpush1.msra.mxu0 0.0
    %173 = vmatprep.subr.mxu0 0.0
    %174 = vmatpush1.msra.mxu0 0.0
    %175 = vmatprep.subr.mxu0 0.0
    %176 = vmatpush1.msra.mxu0 0.0
    %177 = vmatprep.subr.mxu0 0.0
    %178 = vmatpush1.msra.mxu0 0.0
    %179 = vmatprep.subr.mxu0 0.0
    %180 = vmatpush1.msra.mxu0 0.0
    %181 = vmatprep.subr.mxu0 0.0
    %182 = vmatpush1.msra.mxu0 0.0
    %183 = vmatprep.subr.mxu0 0.0
    %184 = vmatpush1.msra.mxu0 0.0
    %185 = vmatprep.subr.mxu0 0.0
    %186 = vmatpush1.msra.mxu0 0.0
    %187 = vmatprep.subr.mxu0 0.0
    %188 = vmatpush1.msra.mxu0 0.0
    %189 = vmatprep.subr.mxu0 0.0
    %190 = vmatpush1.msra.mxu0 0.0
    %191 = vmatprep.subr.mxu0 0.0
    %192 = vmatpush1.msra.mxu0 0.0
    %193 = vmatprep.subr.mxu0 0.0
    %194 = vmatpush1.msra.mxu0 0.0
    %195 = vmatprep.subr.mxu0 0.0
    %196 = vmatpush1.msra.mxu0 0.0
    %197 = vmatprep.subr.mxu0 0.0
    %198 = vmatpush1.msra.mxu0 0.0
    %199 = vmatprep.subr.mxu0 0.0
    %200 = vmatpush1.msra.mxu0 0.0
    %201 = vmatprep.subr.mxu0 0.0
    %202 = vmatpush1.msra.mxu0 0.0
    %203 = vmatprep.subr.mxu0 0.0
    %204 = vmatpush1.msra.mxu0 0.0
    %205 = vmatprep.subr.mxu0 0.0
    %206 = vmatpush1.msra.mxu0 0.0
    %207 = vmatprep.mubr.f32.mxu0 0.0
    %208 = vmatmul.mubr.f32.gmra.mrb[0].mxu0 %v70
    %v209 = vpop.f32.mrb[0].mxu0
    %v210 = vadd.f32 %v54, %v209
    %v211 = vpop.f32.mrb[0].mxu0
    %v212 = vadd.f32 %v58, %v211
    %213 = vdwg.mxu0
    %214 = vmatprep.subr.mxu0 0.0
    %215 = vmatpush1.msra.mxu0 %v35
    %216 = vmatprep.subr.mxu0 0.0
    %217 = vmatpush1.msra.mxu0 %v40
    %218 = vmatprep.subr.mxu0 0.0
    %219 = vmatpush1.msra.mxu0 0.0
    %220 = vmatprep.subr.mxu0 0.0
    %221 = vmatpush1.msra.mxu0 0.0
    %222 = vmatprep.subr.mxu0 0.0
    %223 = vmatpush1.msra.mxu0 0.0
    %224 = vmatprep.subr.mxu0 0.0
    %225 = vmatpush1.msra.mxu0 0.0
    %226 = vmatprep.subr.mxu0 0.0
    %227 = vmatpush1.msra.mxu0 0.0
    %228 = vmatprep.subr.mxu0 0.0
    %229 = vmatpush1.msra.mxu0 0.0
    %230 = vmatprep.subr.mxu0 0.0
    %231 = vmatpush1.msra.mxu0 0.0
    %232 = vmatprep.subr.mxu0 0.0
    %233 = vmatpush1.msra.mxu0 0.0
    %234 = vmatprep.subr.mxu0 0.0
    %235 = vmatpush1.msra.mxu0 0.0
    %236 = vmatprep.subr.mxu0 0.0
    %237 = vmatpush1.msra.mxu0 0.0
    %238 = vmatprep.subr.mxu0 0.0
    %239 = vmatpush1.msra.mxu0 0.0
    %240 = vmatprep.subr.mxu0 0.0
    %241 = vmatpush1.msra.mxu0 0.0
    %242 = vmatprep.subr.mxu0 0.0
    %243 = vmatpush1.msra.mxu0 0.0
    %244 = vmatprep.subr.mxu0 0.0
    %245 = vmatpush1.msra.mxu0 0.0
    %246 = vmatprep.subr.mxu0 0.0
    %247 = vmatpush1.msra.mxu0 0.0
    %248 = vmatprep.subr.mxu0 0.0
    %249 = vmatpush1.msra.mxu0 0.0
    %250 = vmatprep.subr.mxu0 0.0
    %251 = vmatpush1.msra.mxu0 0.0
    %252 = vmatprep.subr.mxu0 0.0
    %253 = vmatpush1.msra.mxu0 0.0
    %254 = vmatprep.subr.mxu0 0.0
    %255 = vmatpush1.msra.mxu0 0.0
    %256 = vmatprep.subr.mxu0 0.0
    %257 = vmatpush1.msra.mxu0 0.0
    %258 = vmatprep.subr.mxu0 0.0
    %259 = vmatpush1.msra.mxu0 0.0
    %260 = vmatprep.subr.mxu0 0.0
    %261 = vmatpush1.msra.mxu0 0.0
    %262 = vmatprep.subr.mxu0 0.0
    %263 = vmatpush1.msra.mxu0 0.0
    %264 = vmatprep.subr.mxu0 0.0
    %265 = vmatpush1.msra.mxu0 0.0
    %266 = vmatprep.subr.mxu0 0.0
    %267 = vmatpush1.msra.mxu0 0.0
    %268 = vmatprep.subr.mxu0 0.0
    %269 = vmatpush1.msra.mxu0 0.0
    %270 = vmatprep.subr.mxu0 0.0
    %271 = vmatpush1.msra.mxu0 0.0
    %272 = vmatprep.subr.mxu0 0.0
    %273 = vmatpush1.msra.mxu0 0.0
    %274 = vmatprep.subr.mxu0 0.0
    %275 = vmatpush1.msra.mxu0 0.0
    %276 = vmatprep.subr.mxu0 0.0
    %277 = vmatpush1.msra.mxu0 0.0
    %278 = vmatprep.mubr.f32.mxu0 0.0
    %279 = vmatmul.mubr.f32.gmra.mrb[0].mxu0 %v70
    %v280 = vpop.f32.mrb[0].mxu0
    %v281 = vadd.f32 %v62, %v280
    %v282 = vpop.f32.mrb[0].mxu0
    %283 = vdwg.mxu0
    %v284 = vmax.f32 %v139, 0.0
    %v285 = vmax.f32 %v141, 0.0
    %v286 = vmax.f32 %v210, 0.0
    %v287 = vmax.f32 %v212, 0.0
    %v288 = vld [vmem:[%s4] sm:$0xff]
    %v289 = vld [vmem:[%s4 + $0x8] sm:$0xff]
    %v290 = vld [vmem:[%s4 + $0x10] sm:$0xff]
    %v291 = vld [vmem:[%s4 + $0x18] sm:$0xff]
    %v292 = vld [vmem:[%s4 + $0x20] sm:$0xff]
    %v293 = vld [vmem:[%s4 + $0x28] sm:$0xff]
    %v294 = vld [vmem:[%s4 + $0x30] sm:$0xff]
    %v295 = vld [vmem:[%s4 + $0x38] sm:$0xff]
    %v296 = vld [vmem:[%s4 + $0x40] sm:$0xff]
    %v297 = vld [vmem:[%s4 + $0x48] sm:$0xff]
    %v298 = vld [vmem:[%s4 + $0x50] sm:$0xff]
    %v299 = vld [vmem:[%s4 + $0x58] sm:$0xff]
    %v300 = vld [vmem:[%s4 + $0x60] sm:$0xff]
    %v301 = vld [vmem:[%s4 + $0x68] sm:$0xff]
    %v302 = vld [vmem:[%s4 + $0x70] sm:$0xff]
    %v303 = vld [vmem:[%s4 + $0x78] sm:$0xff]
    %v304 = vld [vmem:[%s4 + $0x80] sm:$0xff]
    %v305 = vld [vmem:[%s4 + $0x88] sm:$0xff]
    %v306 = vld [vmem:[%s4 + $0x90] sm:$0xff]
    %v307 = vld [vmem:[%s4 + $0x98] sm:$0xff]
    %v308 = vld [vmem:[%s4 + $0xa0] sm:$0xff]
    %v309 = vld [vmem:[%s4 + $0xa8] sm:$0xff]
    %v310 = vld [vmem:[%s4 + $0xb0] sm:$0xff]
    %v311 = vld [vmem:[%s4 + $0xb8] sm:$0xff]
    %v312 = vld [vmem:[%s4 + $0xc0] sm:$0xff]
    %v313 = vld [vmem:[%s4 + $0xc8] sm:$0xff]
    %v314 = vld [vmem:[%s4 + $0xd0] sm:$0xff]
    %v315 = vld [vmem:[%s4 + $0xd8] sm:$0xff]
    %v316 = vld [vmem:[%s4 + $0xe0] sm:$0xff]
    %v317 = vld [vmem:[%s4 + $0xe8] sm:$0xff]
    %v318 = vld [vmem:[%s4 + $0xf0] sm:$0xff]
    %v319 = vld [vmem:[%s4 + $0xf8] sm:$0xff]
    %v320 = vld [vmem:[%s4 + $0x100] sm:$0xff]
    %v321 = vld [vmem:[%s4 + $0x108] sm:$0xff]
    %v322 = vld [vmem:[%s4 + $0x110] sm:$0xff]
    %v323 = vld [vmem:[%s4 + $0x118] sm:$0xff]
    %v324 = vld [vmem:[%s4 + $0x120] sm:$0xff]
    %v325 = vld [vmem:[%s4 + $0x128] sm:$0xff]
    %v326 = vld [vmem:[%s4 + $0x130] sm:$0xff]
    %v327 = vld [vmem:[%s4 + $0x138] sm:$0xff]
    %v328 = vld [vmem:[%s4 + $0x140] sm:$0xff]
    %v329 = vld [vmem:[%s4 + $0x148] sm:$0xff]
    %v330 = vld [vmem:[%s4 + $0x150] sm:$0xff]
    %v331 = vld [vmem:[%s4 + $0x158] sm:$0xff]
    %v332 = vld [vmem:[%s4 + $0x160] sm:$0xff]
    %v333 = vld [vmem:[%s4 + $0x168] sm:$0xff]
    %v334 = vld [vmem:[%s4 + $0x170] sm:$0xff]
    %v335 = vld [vmem:[%s4 + $0x178] sm:$0xff]
    %v336 = vld [vmem:[%s4 + $0x180] sm:$0xff]
    %v337 = vld [vmem:[%s4 + $0x188] sm:$0xff]
    %v338 = vld [vmem:[%s4 + $0x190] sm:$0xff]
    %v339 = vld [vmem:[%s4 + $0x198] sm:$0xff]
    %v340 = vld [vmem:[%s4 + $0x1a0] sm:$0xff]
    %v341 = vld [vmem:[%s4 + $0x1a8] sm:$0xff]
    %v342 = vld [vmem:[%s4 + $0x1b0] sm:$0xff]
    %v343 = vld [vmem:[%s4 + $0x1b8] sm:$0xff]
    %v344 = vld [vmem:[%s4 + $0x1c0] sm:$0xff]
    %v345 = vld [vmem:[%s4 + $0x1c8] sm:$0xff]
    %v346 = vld [vmem:[%s4 + $0x1d0] sm:$0xff]
    %v347 = vld [vmem:[%s4 + $0x1d8] sm:$0xff]
    %v348 = vld [vmem:[%s4 + $0x1e0] sm:$0xff]
    %v349 = vld [vmem:[%s4 + $0x1e8] sm:$0xff]
    %v350 = vld [vmem:[%s4 + $0x1f0] sm:$0xff]
    %v351 = vld [vmem:[%s4 + $0x1f8] sm:$0xff]
    %v352 = vld [vmem:[%s1] sm:$0xff]
    %353 = vmatprep.subr.mxu0 0.0
    %354 = vmatpush1.msra.mxu0 %v288
    %355 = vmatprep.subr.mxu0 0.0
    %356 = vmatpush1.msra.mxu0 %v289
    %357 = vmatprep.subr.mxu0 0.0
    %358 = vmatpush1.msra.mxu0 %v290
    %359 = vmatprep.subr.mxu0 0.0
    %360 = vmatpush1.msra.mxu0 %v291
    %361 = vmatprep.subr.mxu0 0.0
    %362 = vmatpush1.msra.mxu0 %v292
    %363 = vmatprep.subr.mxu0 0.0
    %364 = vmatpush1.msra.mxu0 %v293
    %365 = vmatprep.subr.mxu0 0.0
    %366 = vmatpush1.msra.mxu0 %v294
    %367 = vmatprep.subr.mxu0 0.0
    %368 = vmatpush1.msra.mxu0 %v295
    %369 = vmatprep.subr.mxu0 0.0
    %370 = vmatpush1.msra.mxu0 %v296
    %371 = vmatprep.subr.mxu0 0.0
    %372 = vmatpush1.msra.mxu0 %v297
    %373 = vmatprep.subr.mxu0 0.0
    %374 = vmatpush1.msra.mxu0 %v298
    %375 = vmatprep.subr.mxu0 0.0
    %376 = vmatpush1.msra.mxu0 %v299
    %377 = vmatprep.subr.mxu0 0.0
    %378 = vmatpush1.msra.mxu0 %v300
    %379 = vmatprep.subr.mxu0 0.0
    %380 = vmatpush1.msra.mxu0 %v301
    %381 = vmatprep.subr.mxu0 0.0
    %382 = vmatpush1.msra.mxu0 %v302
    %383 = vmatprep.subr.mxu0 0.0
    %384 = vmatpush1.msra.mxu0 %v303
    %385 = vmatprep.subr.mxu0 0.0
    %386 = vmatpush1.msra.mxu0 %v304
    %387 = vmatprep.subr.mxu0 0.0
    %388 = vmatpush1.msra.mxu0 %v305
    %389 = vmatprep.subr.mxu0 0.0
    %390 = vmatpush1.msra.mxu0 %v306
    %391 = vmatprep.subr.mxu0 0.0
    %392 = vmatpush1.msra.mxu0 %v307
    %393 = vmatprep.subr.mxu0 0.0
    %394 = vmatpush1.msra.mxu0 %v308
    %395 = vmatprep.subr.mxu0 0.0
    %396 = vmatpush1.msra.mxu0 %v309
    %397 = vmatprep.subr.mxu0 0.0
    %398 = vmatpush1.msra.mxu0 %v310
    %399 = vmatprep.subr.mxu0 0.0
    %400 = vmatpush1.msra.mxu0 %v311
    %401 = vmatprep.subr.mxu0 0.0
    %402 = vmatpush1.msra.mxu0 %v312
    %403 = vmatprep.subr.mxu0 0.0
    %404 = vmatpush1.msra.mxu0 %v313
    %405 = vmatprep.subr.mxu0 0.0
    %406 = vmatpush1.msra.mxu0 %v314
    %407 = vmatprep.subr.mxu0 0.0
    %408 = vmatpush1.msra.mxu0 %v315
    %409 = vmatprep.subr.mxu0 0.0
    %410 = vmatpush1.msra.mxu0 %v316
    %411 = vmatprep.subr.mxu0 0.0
    %412 = vmatpush1.msra.mxu0 %v317
    %413 = vmatprep.subr.mxu0 0.0
    %414 = vmatpush1.msra.mxu0 %v318
    %415 = vmatprep.subr.mxu0 0.0
    %416 = vmatpush1.msra.mxu0 %v319
    %417 = vmatprep.mubr.f32.mxu0 %v285
    %418 = vmatmul.mubr.f32.gmra.mrb[0].mxu0 %v284
    %v419 = vpop.f32.mrb[0].mxu0
    %v420 = vadd.f32 %v352, %v419
    %v421 = vpop.f32.mrb[0].mxu0
    %422 = vdwg.mxu0
    %423 = vmatprep.subr.mxu0 0.0
    %424 = vmatpush1.msra.mxu0 %v320
    %425 = vmatprep.subr.mxu0 0.0
    %426 = vmatpush1.msra.mxu0 %v321
    %427 = vmatprep.subr.mxu0 0.0
    %428 = vmatpush1.msra.mxu0 %v322
    %429 = vmatprep.subr.mxu0 0.0
    %430 = vmatpush1.msra.mxu0 %v323
    %431 = vmatprep.subr.mxu0 0.0
    %432 = vmatpush1.msra.mxu0 %v324
    %433 = vmatprep.subr.mxu0 0.0
    %434 = vmatpush1.msra.mxu0 %v325
    %435 = vmatprep.subr.mxu0 0.0
    %436 = vmatpush1.msra.mxu0 %v326
    %437 = vmatprep.subr.mxu0 0.0
    %438 = vmatpush1.msra.mxu0 %v327
    %439 = vmatprep.subr.mxu0 0.0
    %440 = vmatpush1.msra.mxu0 %v328
    %441 = vmatprep.subr.mxu0 0.0
    %442 = vmatpush1.msra.mxu0 %v329
    %443 = vmatprep.subr.mxu0 0.0
    %444 = vmatpush1.msra.mxu0 %v330
    %445 = vmatprep.subr.mxu0 0.0
    %446 = vmatpush1.msra.mxu0 %v331
    %447 = vmatprep.subr.mxu0 0.0
    %448 = vmatpush1.msra.mxu0 %v332
    %449 = vmatprep.subr.mxu0 0.0
    %450 = vmatpush1.msra.mxu0 %v333
    %451 = vmatprep.subr.mxu0 0.0
    %452 = vmatpush1.msra.mxu0 %v334
    %453 = vmatprep.subr.mxu0 0.0
    %454 = vmatpush1.msra.mxu0 %v335
    %455 = vmatprep.subr.mxu0 0.0
    %456 = vmatpush1.msra.mxu0 %v336
    %457 = vmatprep.subr.mxu0 0.0
    %458 = vmatpush1.msra.mxu0 %v337
    %459 = vmatprep.subr.mxu0 0.0
    %460 = vmatpush1.msra.mxu0 %v338
    %461 = vmatprep.subr.mxu0 0.0
    %462 = vmatpush1.msra.mxu0 %v339
    %463 = vmatprep.subr.mxu0 0.0
    %464 = vmatpush1.msra.mxu0 %v340
    %465 = vmatprep.subr.mxu0 0.0
    %466 = vmatpush1.msra.mxu0 %v341
    %467 = vmatprep.subr.mxu0 0.0
    %468 = vmatpush1.msra.mxu0 %v342
    %469 = vmatprep.subr.mxu0 0.0
    %470 = vmatpush1.msra.mxu0 %v343
    %471 = vmatprep.subr.mxu0 0.0
    %472 = vmatpush1.msra.mxu0 %v344
    %473 = vmatprep.subr.mxu0 0.0
    %474 = vmatpush1.msra.mxu0 %v345
    %475 = vmatprep.subr.mxu0 0.0
    %476 = vmatpush1.msra.mxu0 %v346
    %477 = vmatprep.subr.mxu0 0.0
    %478 = vmatpush1.msra.mxu0 %v347
    %479 = vmatprep.subr.mxu0 0.0
    %480 = vmatpush1.msra.mxu0 %v348
    %481 = vmatprep.subr.mxu0 0.0
    %482 = vmatpush1.msra.mxu0 %v349
    %483 = vmatprep.subr.mxu0 0.0
    %484 = vmatpush1.msra.mxu0 %v350
    %485 = vmatprep.subr.mxu0 0.0
    %486 = vmatpush1.msra.mxu0 %v351
    %487 = vmatprep.mubr.f32.mxu0 %v287
    %488 = vmatmul.mubr.f32.gmra.mrb[0].mxu0 %v286
    %v489 = vpop.f32.mrb[0].mxu0
    %v490 = vadd.f32 %v420, %v489
    %v491 = vpop.f32.mrb[0].mxu0
    %492 = vdwg.mxu0
    %v493 = vmax.f32 %v490, 0.0
    %v494 = vld [vmem:[%s5] sm:$0xff]
    %v495 = vld [vmem:[%s5 + $0x8] sm:$0xff]
    %v496 = vld [vmem:[%s5 + $0x10] sm:$0xff]
    %v497 = vld [vmem:[%s5 + $0x18] sm:$0xff]
    %v498 = vld [vmem:[%s6] sm:$0x1]
    %v500 = vlaneseq
    %v501 = vshrl.u32 %v500, 7
    %v502 = vsub.s32 0, %v501
    %v503 = vrot.slane %v498, %v502
    %vm505 = vcmask 261120
    %v507 = vsel %vm505, %v493, 0
    %509 = vmatprep.subr.mxu0 0.0
    %510 = vmatpush1.msra.mxu0 %v494
    %511 = vmatprep.subr.mxu0 0.0
    %512 = vmatpush1.msra.mxu0 %v495
    %513 = vmatprep.subr.mxu0 0.0
    %514 = vmatpush1.msra.mxu0 %v496
    %515 = vmatprep.subr.mxu0 0.0
    %516 = vmatpush1.msra.mxu0 %v497
    %517 = vmatprep.subr.mxu0 0.0
    %518 = vmatpush1.msra.mxu0 0.0
    %519 = vmatprep.subr.mxu0 0.0
    %520 = vmatpush1.msra.mxu0 0.0
    %521 = vmatprep.subr.mxu0 0.0
    %522 = vmatpush1.msra.mxu0 0.0
    %523 = vmatprep.subr.mxu0 0.0
    %524 = vmatpush1.msra.mxu0 0.0
    %525 = vmatprep.subr.mxu0 0.0
    %526 = vmatpush1.msra.mxu0 0.0
    %527 = vmatprep.subr.mxu0 0.0
    %528 = vmatpush1.msra.mxu0 0.0
    %529 = vmatprep.subr.mxu0 0.0
    %530 = vmatpush1.msra.mxu0 0.0
    %531 = vmatprep.subr.mxu0 0.0
    %532 = vmatpush1.msra.mxu0 0.0
    %533 = vmatprep.subr.mxu0 0.0
    %534 = vmatpush1.msra.mxu0 0.0
    %535 = vmatprep.subr.mxu0 0.0
    %536 = vmatpush1.msra.mxu0 0.0
    %537 = vmatprep.subr.mxu0 0.0
    %538 = vmatpush1.msra.mxu0 0.0
    %539 = vmatprep.subr.mxu0 0.0
    %540 = vmatpush1.msra.mxu0 0.0
    %541 = vmatprep.subr.mxu0 0.0
    %542 = vmatpush1.msra.mxu0 0.0
    %543 = vmatprep.subr.mxu0 0.0
    %544 = vmatpush1.msra.mxu0 0.0
    %545 = vmatprep.subr.mxu0 0.0
    %546 = vmatpush1.msra.mxu0 0.0
    %547 = vmatprep.subr.mxu0 0.0
    %548 = vmatpush1.msra.mxu0 0.0
    %549 = vmatprep.subr.mxu0 0.0
    %550 = vmatpush1.msra.mxu0 0.0
    %551 = vmatprep.subr.mxu0 0.0
    %552 = vmatpush1.msra.mxu0 0.0
    %553 = vmatprep.subr.mxu0 0.0
    %554 = vmatpush1.msra.mxu0 0.0
    %555 = vmatprep.subr.mxu0 0.0
    %556 = vmatpush1.msra.mxu0 0.0
    %557 = vmatprep.subr.mxu0 0.0
    %558 = vmatpush1.msra.mxu0 0.0
    %559 = vmatprep.subr.mxu0 0.0
    %560 = vmatpush1.msra.mxu0 0.0
    %561 = vmatprep.subr.mxu0 0.0
    %562 = vmatpush1.msra.mxu0 0.0
    %563 = vmatprep.subr.mxu0 0.0
    %564 = vmatpush1.msra.mxu0 0.0
    %565 = vmatprep.subr.mxu0 0.0
    %566 = vmatpush1.msra.mxu0 0.0
    %567 = vmatprep.subr.mxu0 0.0
    %568 = vmatpush1.msra.mxu0 0.0
    %569 = vmatprep.subr.mxu0 0.0
    %570 = vmatpush1.msra.mxu0 0.0
    %571 = vmatprep.subr.mxu0 0.0
    %572 = vmatpush1.msra.mxu0 0.0
    %573 = vmatprep.mubr.f32.mxu0 0.0
    %574 = vmatmul.mubr.f32.gmra.mrb[0].mxu0 %v507
    %v575 = vpop.f32.mrb[0].mxu0
    %v576 = vadd.f32 %v503, %v575
    %v577 = vpop.f32.mrb[0].mxu0
    %578 = vdwg.mxu0
    %v579 = vmax.f32 %v576, 0.0
    %v580 = vld [vmem:[%s7] sm:$0xff]
    %v581 = vld [vmem:[%s7 + $0x8] sm:$0xff]
    %v583 = vsel %vm68, %v579, 0
    %585 = vmatprep.subr.mxu0 0.0
    %586 = vmatpush1.msra.mxu0 %v580
    %587 = vmatprep.subr.mxu0 0.0
    %588 = vmatpush1.msra.mxu0 %v581
    %589 = vmatprep.subr.mxu0 0.0
    %590 = vmatpush1.msra.mxu0 0.0
    %591 = vmatprep.subr.mxu0 0.0
    %592 = vmatpush1.msra.mxu0 0.0
    %593 = vmatprep.subr.mxu0 0.0
    %594 = vmatpush1.msra.mxu0 0.0
    %595 = vmatprep.subr.mxu0 0.0
    %596 = vmatpush1.msra.mxu0 0.0
    %597 = vmatprep.subr.mxu0 0.0
    %598 = vmatpush1.msra.mxu0 0.0
    %599 = vmatprep.subr.mxu0 0.0
    %600 = vmatpush1.msra.mxu0 0.0
    %601 = vmatprep.subr.mxu0 0.0
    %602 = vmatpush1.msra.mxu0 0.0
    %603 = vmatprep.subr.mxu0 0.0
    %604 = vmatpush1.msra.mxu0 0.0
    %605 = vmatprep.subr.mxu0 0.0
    %606 = vmatpush1.msra.mxu0 0.0
    %607 = vmatprep.subr.mxu0 0.0
    %608 = vmatpush1.msra.mxu0 0.0
    %609 = vmatprep.subr.mxu0 0.0
    %610 = vmatpush1.msra.mxu0 0.0
    %611 = vmatprep.subr.mxu0 0.0
    %612 = vmatpush1.msra.mxu0 0.0
    %613 = vmatprep.subr.mxu0 0.0
    %614 = vmatpush1.msra.mxu0 0.0
    %615 = vmatprep.subr.mxu0 0.0
    %616 = vmatpush1.msra.mxu0 0.0
    %617 = vmatprep.subr.mxu0 0.0
    %618 = vmatpush1.msra.mxu0 0.0
    %619 = vmatprep.subr.mxu0 0.0
    %620 = vmatpush1.msra.mxu0 0.0
    %621 = vmatprep.subr.mxu0 0.0
    %622 = vmatpush1.msra.mxu0 0.0
    %623 = vmatprep.subr.mxu0 0.0
    %624 = vmatpush1.msra.mxu0 0.0
    %625 = vmatprep.subr.mxu0 0.0
    %626 = vmatpush1.msra.mxu0 0.0
    %627 = vmatprep.subr.mxu0 0.0
    %628 = vmatpush1.msra.mxu0 0.0
    %629 = vmatprep.subr.mxu0 0.0
    %630 = vmatpush1.msra.mxu0 0.0
    %631 = vmatprep.subr.mxu0 0.0
    %632 = vmatpush1.msra.mxu0 0.0
    %633 = vmatprep.subr.mxu0 0.0
    %634 = vmatpush1.msra.mxu0 0.0
    %635 = vmatprep.subr.mxu0 0.0
    %636 = vmatpush1.msra.mxu0 0.0
    %637 = vmatprep.subr.mxu0 0.0
    %638 = vmatpush1.msra.mxu0 0.0
    %639 = vmatprep.subr.mxu0 0.0
    %640 = vmatpush1.msra.mxu0 0.0
    %641 = vmatprep.subr.mxu0 0.0
    %642 = vmatpush1.msra.mxu0 0.0
    %643 = vmatprep.subr.mxu0 0.0
    %644 = vmatpush1.msra.mxu0 0.0
    %645 = vmatprep.subr.mxu0 0.0
    %646 = vmatpush1.msra.mxu0 0.0
    %647 = vmatprep.subr.mxu0 0.0
    %648 = vmatpush1.msra.mxu0 0.0
    %649 = vmatprep.mubr.f32.mxu0 0.0
    %650 = vmatmul.mubr.f32.gmra.mrb[0].mxu0 %v583
    %v651 = vpop.f32.mrb[0].mxu0
    %v652 = vadd.f32 %v281, %v651
    %v653 = vpop.f32.mrb[0].mxu0
    %654 = vdwg.mxu0
    %655 = vst [vmem:[#allocation2] sm:$0xff] %v652
    // Predicated region
    $region34: #{tpu_custom_call.1} parent=1 // pred_check
      _
    $region35: #{tpu_custom_call.1} parent=1 // pred_check_branch
      %657 = sbr.rel (0) target = $region37
    $region36: #{tpu_custom_call.1} parent=1 // pred_region
      %s659 = ssub.s32 128, 128
      %660 = vsyncadd [#allocation3], %s659
      %s662 = sshll.u32 [#allocation2], 4
      %s663 = int_to_ptr.vmem [resolvable:$true] %s662
      %665 = dma.vmem_to_hbm [thread:$0]  %s663, 128, %s8, [#allocation3]
    $region37: #{tpu_custom_call.1} parent=1 // pred_fallthru
      _
    // Predicated region
    $region38: #{tpu_custom_call.1} parent=1 // pred_check
      _
    $region39: #{tpu_custom_call.1} parent=1 // pred_check_branch
      %667 = sbr.rel (0) target = $region41
    $region40: #{tpu_custom_call.1} parent=1 // pred_region
      %668 = dma.done [#allocation3], 128
    $region41: #{tpu_custom_call.1} parent=1 // pred_fallthru
      _
    %669 = vsyncpa [#allocation3], 1

</llo_original>
